<compile_context>
chip_gen: v7x
topology: tpu7x:2x2x1
jax: 0.10.0
libtpu: 0.0.40
codegen_flags: <defaults>
</compile_context>

<pallas_src>
import jax
import jax.numpy as jnp
from jax.experimental import pallas as pl
from jax.experimental.pallas import tpu as pltpu


def _actnorm_kernel(x_ref, scale_ref, bias_ref, o_ref):
    # x_ref / o_ref: (ROWS_TILE, HW_TILE)
    # scale_ref / bias_ref: (ROWS_TILE, 1), broadcast over the lane axis.
    o_ref[...] = scale_ref[...] * (x_ref[...] + bias_ref[...])


def _pick_tiles(rows, hw):
    # Lane (fast) axis: multiple of 128 when tiled, otherwise the full dim
    # (full-dim blocks are always legal regardless of alignment).
    if hw <= 2048:
        hw_tile = hw
    else:
        hw_tile = 2048            # multiple of 128; ragged edge handled by Pallas
    # Sublane axis: multiple of 8 when tiled, otherwise the full dim.
    if rows <= 256:
        rows_tile = rows
    else:
        rows_tile = 256           # multiple of 8
    return rows_tile, hw_tile


def pure_actnorm_forward(x, scale, bias):
    """x: (N, C, H, W); scale/bias: (C,). Returns scale*(x+bias) broadcast NCHW."""
    N, C, H, W = x.shape
    HW = H * W
    rows = N * C

    x2 = x.reshape(rows, HW)
    # Per-row parameters: row index = n*C + c -> needs channel c. Tiling the
    # (C,) params N times gives exactly that (tiny: rows*4 bytes each).
    scale_rows = jnp.tile(scale.astype(x.dtype), (N,)).reshape(rows, 1)
    bias_rows = jnp.tile(bias.astype(x.dtype), (N,)).reshape(rows, 1)

    rows_tile, hw_tile = _pick_tiles(rows, HW)
    grid = (pl.cdiv(rows, rows_tile), pl.cdiv(HW, hw_tile))

    # Explicit VMEM budget: in + out tiles, double-buffered, plus params + slack.
    bpe = jnp.dtype(x.dtype).itemsize
    tile_bytes = rows_tile * hw_tile * bpe
    need = 2 * 2 * tile_bytes + 2 * 2 * rows_tile * bpe
    vmem_limit = int(min(max(2 * need, 16 * 1024 * 1024), 32 * 1024 * 1024))

    out2 = pl.pallas_call(
        _actnorm_kernel,
        out_shape=jax.ShapeDtypeStruct((rows, HW), x.dtype),
        grid_spec=pltpu.PrefetchScalarGridSpec(
            num_scalar_prefetch=0,
            grid=grid,
            in_specs=[
                pl.BlockSpec((rows_tile, hw_tile), lambda r, t: (r, t)),
                pl.BlockSpec((rows_tile, 1), lambda r, t: (r, 0)),
                pl.BlockSpec((rows_tile, 1), lambda r, t: (r, 0)),
            ],
            out_specs=pl.BlockSpec((rows_tile, hw_tile), lambda r, t: (r, t)),
        ),
        compiler_params=pltpu.CompilerParams(
            dimension_semantics=("parallel", "parallel"),
            vmem_limit_bytes=vmem_limit,
        ),
    )(x2, scale_rows, bias_rows)

    return out2.reshape(N, C, H, W)


def data_dependent_init(x):
    """Replicates PureActNorm.initialize(x) (one-time setup, plain-JAX glue):
    bias = -mean over (N, H, W) per channel, scale = 1/(std + 1e-4) with
    torch's unbiased std (ddof=1)."""
    # TODO(synk): in-place nn.Parameter mutation / the print() side effect has
    # no Pallas equivalent; this returns the values instead.
    N, C, H, W = x.shape
    flat = jnp.transpose(x, (1, 0, 2, 3)).reshape(C, -1)
    mean = flat.mean(axis=1)
    std = flat.std(axis=1, ddof=1)
    return -mean, 1.0 / (std + 0.0001)


def _reference(x, scale, bias):
    return scale[None, :, None, None] * (x + bias[None, :, None, None])


if __name__ == "__main__":
    key = jax.random.PRNGKey(0)

    # Primary small test: batch=2, channels=4, spatial=16.
    N, C, H, W = 2, 4, 16, 16
    x = jax.random.normal(key, (N, C, H, W), dtype=jnp.float32)
    bias = jnp.linspace(-0.25, 0.25, C, dtype=jnp.float32)
    scale = jnp.linspace(0.5, 1.5, C, dtype=jnp.float32)

    y = jax.block_until_ready(pure_actnorm_forward(x, scale, bias))
    y_ref = _reference(x, scale, bias)
    assert y.shape == (N, C, H, W)
    assert jnp.allclose(y, y_ref, atol=1e-6, rtol=1e-6)

    # Secondary robustness check: rows not a multiple of 8, lane dim not a
    # multiple of 128 (exercises full-dim / non-aligned block handling).
    N2, C2, H2, W2 = 1, 12, 40, 40
    key2 = jax.random.PRNGKey(1)
    x2 = jax.random.normal(key2, (N2, C2, H2, W2), dtype=jnp.float32)
    bias2, scale2 = data_dependent_init(x2)
    y2 = jax.block_until_ready(pure_actnorm_forward(x2, scale2, bias2))
    y2_ref = _reference(x2, scale2, bias2)
    assert jnp.allclose(y2, y2_ref, atol=1e-5, rtol=1e-5)

    print("KERNEL_OK")
</pallas_src>

<mosaic_0001>
module attributes {stable_mosaic.version = 11 : i64} {
  func.func @_actnorm_kernel(%arg0: i32, %arg1: i32, %arg2: memref<8x256xf32, #tpu.memory_space<vmem>>, %arg3: memref<8x1xf32, #tpu.memory_space<vmem>>, %arg4: memref<8x1xf32, #tpu.memory_space<vmem>>, %arg5: memref<8x256xf32, #tpu.memory_space<vmem>>) attributes {dimension_semantics = [#tpu.dimension_semantics<parallel>, #tpu.dimension_semantics<parallel>], iteration_bounds = array<i64: 1, 1>, scalar_prefetch = 0 : i64, scratch_operands = 0 : i64, tpu.core_type = #tpu.core_type<tc>, window_params = [{transform_indices = @transform_0, window_bounds = array<i64: 8, 256>}, {transform_indices = @transform_1, window_bounds = array<i64: 8, 1>}, {transform_indices = @transform_2, window_bounds = array<i64: 8, 1>}, {transform_indices = @transform_3, window_bounds = array<i64: 8, 256>}]} {
    %c0 = arith.constant 0 : index
    %c0_0 = arith.constant 0 : index
    %0 = vector.load %arg3[%c0, %c0_0] : memref<8x1xf32, #tpu.memory_space<vmem>>, vector<8x1xf32>
    %c0_1 = arith.constant 0 : index
    %c0_2 = arith.constant 0 : index
    %1 = vector.load %arg2[%c0_1, %c0_2] : memref<8x256xf32, #tpu.memory_space<vmem>>, vector<8x256xf32>
    %c0_3 = arith.constant 0 : index
    %c0_4 = arith.constant 0 : index
    %2 = vector.load %arg4[%c0_3, %c0_4] : memref<8x1xf32, #tpu.memory_space<vmem>>, vector<8x1xf32>
    %3 = vector.broadcast %2 : vector<8x1xf32> to vector<8x256xf32>
    %4 = arith.addf %1, %3 : vector<8x256xf32>
    %5 = vector.broadcast %0 : vector<8x1xf32> to vector<8x256xf32>
    %6 = arith.mulf %5, %4 : vector<8x256xf32>
    %c0_5 = arith.constant 0 : index
    %c0_6 = arith.constant 0 : index
    %7 = vector.load %arg5[%c0_5, %c0_6] : memref<8x256xf32, #tpu.memory_space<vmem>>, vector<8x256xf32>
    tpu.vector_store %arg5[%c0_5, %c0_6], %6 {strides = array<i32>} : memref<8x256xf32, #tpu.memory_space<vmem>>, vector<8x256xf32>,
    return
  }
  func.func @transform_0(%arg0: i32, %arg1: i32) -> (i32, i32) {
    %c0_i32 = arith.constant 0 : i32
    return %arg0, %arg1 : i32, i32
  }
  func.func @transform_1(%arg0: i32, %arg1: i32) -> (i32, i32) {
    %c0_i32 = arith.constant 0 : i32
    %c0_i32_0 = arith.constant 0 : i32
    return %arg0, %c0_i32 : i32, i32
  }
  func.func @transform_2(%arg0: i32, %arg1: i32) -> (i32, i32) {
    %c0_i32 = arith.constant 0 : i32
    %c0_i32_0 = arith.constant 0 : i32
    return %arg0, %c0_i32 : i32, i32
  }
  func.func @transform_3(%arg0: i32, %arg1: i32) -> (i32, i32) {
    %c0_i32 = arith.constant 0 : i32
    return %arg0, %arg1 : i32, i32
  }
}

</mosaic_0001>

<llo_original>
// kernel: tpu_custom_call.1
$region0: #{tpu_custom_call.1}
  #allocation0 [shape = 'u32[]', space=smem, size = 0x4, offset = 0x4, fixed_abs, tag = 'smem constant byte address 0x4 - core index']
  #allocation1 [shape = 'u32[144,128]{1,0:T(1,128)}', space=vmem, size = 0x12000, scoped, tag = 'internal scratch']
  %s0 = inlined_call_operand.vmem [shape: f32[8,256], index: 0, kind: input, shape index: {}]
  %s1 = inlined_call_operand.vmem [shape: f32[8,1], index: 1, kind: input, shape index: {}]
  %s2 = inlined_call_operand.vmem [shape: f32[8,1], index: 2, kind: input, shape index: {}]
  %s3 = inlined_call_operand.hbm [shape: f32[8,256], index: 3, kind: output, shape index: {}]
  %s4 = sld [smem:[#allocation0]]
  $region22: #{tpu_custom_call.1} parent=0
    _
  %s6 = ssub.s32 1, %s4
  %s7 = scalar_select 0, %s6, %s4
  $region1: #{tpu_custom_call.1} parent=0
    #allocation2 [shape = 'u8[8192]{0}', space=vmem, size = 0x2000, scoped, tag = 'output window, operand 0, single buffered']
    #allocation3 [shape = 's32[1]{0}', space=sflag, size = 0x4, scoped, tag = 'scoped memory for tpu_custom_call.1']
    %8 = vsyncpa [#allocation3], 0
    // Predicated region
    $region2: #{tpu_custom_call.1} parent=1 // pred_check
      _
    $region3: #{tpu_custom_call.1} parent=1 // pred_check_branch
      %10 = sbr.rel (0) target = $region5
    $region4: #{tpu_custom_call.1} parent=1 // pred_region
      _
    $region5: #{tpu_custom_call.1} parent=1 // pred_fallthru
      _
    // Predicated region
    $region6: #{tpu_custom_call.1} parent=1 // pred_check
      _
    $region7: #{tpu_custom_call.1} parent=1 // pred_check_branch
      %12 = sbr.rel (0) target = $region9
    $region8: #{tpu_custom_call.1} parent=1 // pred_region
      _
    $region9: #{tpu_custom_call.1} parent=1 // pred_fallthru
      _
    // Predicated region
    $region10: #{tpu_custom_call.1} parent=1 // pred_check
      _
    $region11: #{tpu_custom_call.1} parent=1 // pred_check_branch
      %14 = sbr.rel (0) target = $region13
    $region12: #{tpu_custom_call.1} parent=1 // pred_region
      _
    $region13: #{tpu_custom_call.1} parent=1 // pred_fallthru
      _
    %v15 = vld [vmem:[%s1] sm:$0xff]
    %v16 = vld [vmem:[%s0] sm:$0xff]
    %v17 = vld [vmem:[%s0 + $0x8] sm:$0xff]
    %v18 = vld [vmem:[%s2] sm:$0xff]
    %20 = vset.pattern.permute.xlu0 0
    %21 = vperm.xlu0 %20, %v18
    %v22 = vpop.permute.xlu0 %21
    %v24 = vadd.f32 %v16, %v22
    %v25 = vadd.f32 %v17, %v22
    %27 = vset.pattern.permute.xlu0 0
    %28 = vperm.xlu0 %27, %v15
    %v29 = vpop.permute.xlu0 %28
    %v31 = vmul.f32 %v29, %v24
    %v32 = vmul.f32 %v29, %v25
    %33 = vst [vmem:[#allocation2] sm:$0xff] %v31
    %34 = vst [vmem:[#allocation2 + $0x8] sm:$0xff] %v32
    // Predicated region
    $region14: #{tpu_custom_call.1} parent=1 // pred_check
      _
    $region15: #{tpu_custom_call.1} parent=1 // pred_check_branch
      %36 = sbr.rel (0) target = $region17
    $region16: #{tpu_custom_call.1} parent=1 // pred_region
      %s38 = ssub.s32 256, 256
      %39 = vsyncadd [#allocation3], %s38
      %s41 = sshll.u32 [#allocation2], 4
      %s42 = int_to_ptr.vmem [resolvable:$true] %s41
      %44 = dma.vmem_to_hbm [thread:$0]  %s42, 256, %s3, [#allocation3]
    $region17: #{tpu_custom_call.1} parent=1 // pred_fallthru
      _
    // Predicated region
    $region18: #{tpu_custom_call.1} parent=1 // pred_check
      _
    $region19: #{tpu_custom_call.1} parent=1 // pred_check_branch
      %46 = sbr.rel (0) target = $region21
    $region20: #{tpu_custom_call.1} parent=1 // pred_region
      %47 = dma.done [#allocation3], 256
    $region21: #{tpu_custom_call.1} parent=1 // pred_fallthru
      _
    %48 = vsyncpa [#allocation3], 1

</llo_original>
